<compile_context>
chip_gen: v7x
topology: tpu7x:2x2x1
jax: 0.10.0
libtpu: 0.0.40
codegen_flags: <defaults>
</compile_context>

<pallas_src>
import jax
import jax.numpy as jnp
import numpy as np
from jax.experimental import pallas as pl
from jax.experimental.pallas import tpu as pltpu


def attention_kernel(q_ref, pm_ref, xcol_ref, mask_ref, mem_ref,
                     wq_t_ref, cw_t_ref, wd_t_ref, v_ref,
                     ctx_ref, aw_ref):
    q = q_ref[...]          # (Bb, R)        query, R on lanes
    pm = pm_ref[...]        # (Bb, T, A)     processed_memory
    xcol = xcol_ref[...]    # (Bb, T, 2K)    im2col of attention_weights_cat
    maskf = mask_ref[...]   # (Bb, T)        1.0 == padded position
    mem = mem_ref[...]      # (Bb, T, E)     encoder outputs
    wq_t = wq_t_ref[...]    # (R, A)         query_layer weight, transposed
    cw_t = cw_t_ref[...]    # (2K, F)        location_conv weight, flattened+T
    wd_t = wd_t_ref[...]    # (F, A)         location_dense weight, transposed
    v = v_ref[...]          # (1, A)         v weight

    Bb, T, A = pm.shape
    K2 = xcol.shape[-1]

    # query_layer: (Bb, A) — whole batch block is the matmul M dimension.
    pq = jnp.dot(q, wq_t, preferred_element_type=jnp.float32)

    # location_conv fused into one matmul (K taps folded into the contraction),
    # then location_dense.  (Bb*T, 2K) x (2K, F) -> (Bb*T, F) -> (Bb*T, A).
    xcol2 = xcol.reshape(Bb * T, K2)
    conv = jnp.dot(xcol2, cw_t, preferred_element_type=jnp.float32)
    pa = jnp.dot(conv, wd_t, preferred_element_type=jnp.float32)
    pa = pa.reshape(Bb, T, A)

    # energies = v . tanh(pq + pa + pm): VPU multiply + XLU lane-reduce over A
    # (avoids an N=1 matmul on the MXU).
    combined = jnp.tanh(pq[:, None, :] + pa + pm.astype(jnp.float32))  # (Bb,T,A)
    v32 = v.astype(jnp.float32).reshape(1, 1, A)
    energies = jnp.sum(combined * v32, axis=-1)                        # (Bb, T)

    # masked_fill_(mask, score_mask_value): large finite negative instead of
    # -inf (identical results for rows with >=1 valid position, no NaNs for
    # fully masked rows).
    energies = jnp.where(maskf > 0.5, -1e30, energies)

    # softmax over T.
    m = jnp.max(energies, axis=-1, keepdims=True)
    e = jnp.exp(energies - m)
    aw = e / jnp.sum(e, axis=-1, keepdims=True)                        # (Bb, T)

    # attention_context = aw @ memory, as broadcast-multiply + sublane reduce
    # over T (avoids a batched M=1 matvec on the MXU).
    ctx = jnp.sum(aw[:, :, None] * mem.astype(jnp.float32), axis=1)    # (Bb, E)

    aw_ref[...] = aw.astype(aw_ref.dtype)
    ctx_ref[...] = ctx.astype(ctx_ref.dtype)


def attention_forward(params, attention_hidden_state, memory, processed_memory,
                      attention_weights_cat, mask, *,
                      stream_dtype=jnp.float32, batch_block=8):
    wq = params["query_w"]      # (A, R)   torch Linear weight (out, in)
    cw = params["loc_conv_w"]   # (F, 2, K) torch Conv1d weight (out, in, K)
    wd = params["loc_dense_w"]  # (A, F)
    v = params["v_w"]           # (1, A)

    B, T, E = memory.shape
    A, R = wq.shape
    F_, _, K = cw.shape
    pad = (K - 1) // 2

    # --- plain-JAX glue: im2col for the location conv --------------------
    # xcol[b, t, c*K + k] = awc_padded[b, c, t + k]  (zero padding)
    awc = attention_weights_cat.astype(jnp.float32)
    awc_pad = jnp.pad(awc, ((0, 0), (0, 0), (pad, pad)))                  # (B,2,T+2p)
    cols = jnp.stack([awc_pad[:, :, k:k + T] for k in range(K)], axis=-1)  # (B,2,T,K)
    xcol = jnp.transpose(cols, (0, 2, 1, 3)).reshape(B, T, 2 * K)          # (B,T,2K)
    # conv weight flattened to match the (c*K + k) ordering, then transposed.
    cw_t = jnp.transpose(cw.reshape(F_, 2 * K))                            # (2K, F)
    wq_t = jnp.transpose(wq)                                               # (R, A)
    wd_t = jnp.transpose(wd)                                               # (F, A)

    q = attention_hidden_state.astype(jnp.float32)                         # (B, R)
    pm = processed_memory.astype(jnp.float32)                              # (B, T, A)
    mem = memory.astype(jnp.float32)                                       # (B, T, E)
    mask_f = mask.astype(jnp.float32)                                      # (B, T)

    # --- batch blocking (single grid step here; scales for larger B) -----
    Bblk = min(batch_block, B)
    Bp = ((B + Bblk - 1) // Bblk) * Bblk
    if Bp != B:
        pb = Bp - B
        q = jnp.pad(q, ((0, pb), (0, 0)))
        pm = jnp.pad(pm, ((0, pb), (0, 0), (0, 0)))
        xcol = jnp.pad(xcol, ((0, pb), (0, 0), (0, 0)))
        mem = jnp.pad(mem, ((0, pb), (0, 0), (0, 0)))
        mask_f = jnp.pad(mask_f, ((0, pb), (0, 0)), constant_values=1.0)

    sd = stream_dtype
    args = (q.astype(sd), pm.astype(sd), xcol.astype(sd), mask_f,
            mem.astype(sd), wq_t.astype(sd), cw_t.astype(sd),
            wd_t.astype(sd), v.astype(sd))

    ctx, aw = pl.pallas_call(
        attention_kernel,
        out_shape=(jax.ShapeDtypeStruct((Bp, E), jnp.float32),
                   jax.ShapeDtypeStruct((Bp, T), jnp.float32)),
        grid=(Bp // Bblk,),
        in_specs=[
            pl.BlockSpec((Bblk, R), lambda b: (b, 0)),
            pl.BlockSpec((Bblk, T, A), lambda b: (b, 0, 0)),
            pl.BlockSpec((Bblk, T, 2 * K), lambda b: (b, 0, 0)),
            pl.BlockSpec((Bblk, T), lambda b: (b, 0)),
            pl.BlockSpec((Bblk, T, E), lambda b: (b, 0, 0)),
            pl.BlockSpec((R, A), lambda b: (0, 0)),
            pl.BlockSpec((2 * K, F_), lambda b: (0, 0)),
            pl.BlockSpec((F_, A), lambda b: (0, 0)),
            pl.BlockSpec((1, A), lambda b: (0, 0)),
        ],
        out_specs=(pl.BlockSpec((Bblk, E), lambda b: (b, 0)),
                   pl.BlockSpec((Bblk, T), lambda b: (b, 0))),
        compiler_params=pltpu.CompilerParams(
            # batch axis has no carry -> parallel (sharded over v7x's 2 TCs)
            dimension_semantics=("parallel",)),
    )(*args)

    return ctx[:B], aw[:B]


def attention_reference(params, query, memory, processed_memory,
                        attention_weights_cat, mask):
    """Pure-JAX reference mirroring the PyTorch forward."""
    wq = params["query_w"]
    cw = params["loc_conv_w"]
    wd = params["loc_dense_w"]
    v = params["v_w"]
    K = cw.shape[2]
    pad = (K - 1) // 2

    processed_query = (query @ wq.T)[:, None, :]                 # (B, 1, A)
    conv_out = jax.lax.conv_general_dilated(
        attention_weights_cat, cw, window_strides=(1,), padding=[(pad, pad)],
        dimension_numbers=("NCH", "OIH", "NCH"))                 # (B, F, T)
    pa = jnp.transpose(conv_out, (0, 2, 1)) @ wd.T               # (B, T, A)
    energies = (jnp.tanh(processed_query + pa + processed_memory) @ v.T)[..., 0]
    energies = jnp.where(mask, -jnp.inf, energies)
    aw = jax.nn.softmax(energies, axis=1)
    ctx = jnp.einsum("bt,bte->be", aw, memory)
    return ctx, aw


def xavier_uniform(key, shape, fan_in, fan_out, gain=1.0):
    a = gain * np.sqrt(6.0 / (fan_in + fan_out))
    return jax.random.uniform(key, shape, jnp.float32, minval=-a, maxval=a)


if __name__ == "__main__":
    # Module hyper-parameters (small).
    attention_rnn_dim = 32      # R
    embedding_dim = 16          # E
    attention_dim = 32          # A
    attention_location_n_filters = 4   # F
    attention_location_kernel_size = 3  # K (odd)
    B, T = 2, 8

    key = jax.random.PRNGKey(0)
    ks = jax.random.split(key, 10)
    tanh_gain = 5.0 / 3.0

    params = {
        # query_layer: Linear(R -> A), no bias, tanh gain
        "query_w": xavier_uniform(ks[0], (attention_dim, attention_rnn_dim),
                                  attention_rnn_dim, attention_dim, tanh_gain),
        # location_conv: Conv1d(2 -> F, kernel K), no bias, linear gain
        "loc_conv_w": xavier_uniform(
            ks[1], (attention_location_n_filters, 2, attention_location_kernel_size),
            2 * attention_location_kernel_size,
            attention_location_n_filters * attention_location_kernel_size, 1.0),
        # location_dense: Linear(F -> A), no bias, tanh gain
        "loc_dense_w": xavier_uniform(
            ks[2], (attention_dim, attention_location_n_filters),
            attention_location_n_filters, attention_dim, tanh_gain),
        # v: Linear(A -> 1), no bias
        "v_w": xavier_uniform(ks[3], (1, attention_dim), attention_dim, 1, 1.0),
    }
    # memory_layer weight (not used in Attention.forward; glue only).
    memory_w = xavier_uniform(ks[4], (attention_dim, embedding_dim),
                              embedding_dim, attention_dim, tanh_gain)

    attention_hidden_state = jax.random.normal(ks[5], (B, attention_rnn_dim), jnp.float32)
    memory = jax.random.normal(ks[6], (B, T, embedding_dim), jnp.float32)
    processed_memory = memory @ memory_w.T                              # (B, T, A)
    attention_weights_cat = jax.nn.softmax(
        jax.random.normal(ks[7], (B, 2, T), jnp.float32), axis=-1)
    mask = jnp.array([[False] * T,
                      [False] * (T - 3) + [True] * 3])                   # (B, T)

    ctx_ref, aw_ref = attention_reference(params, attention_hidden_state, memory,
                                          processed_memory, attention_weights_cat, mask)

    # f32 streams: strict check against the reference.
    ctx, aw = attention_forward(params, attention_hidden_state, memory,
                                processed_memory, attention_weights_cat, mask,
                                stream_dtype=jnp.float32)
    jax.block_until_ready((ctx, aw))
    np.testing.assert_allclose(np.asarray(ctx), np.asarray(ctx_ref), rtol=1e-5, atol=1e-5)
    np.testing.assert_allclose(np.asarray(aw), np.asarray(aw_ref), rtol=1e-5, atol=1e-5)

    # bf16 streams (recommended for v6e/v7x): f32 accumulation, looser check.
    ctx_bf, aw_bf = attention_forward(params, attention_hidden_state, memory,
                                      processed_memory, attention_weights_cat, mask,
                                      stream_dtype=jnp.bfloat16)
    jax.block_until_ready((ctx_bf, aw_bf))
    np.testing.assert_allclose(np.asarray(ctx_bf), np.asarray(ctx_ref), rtol=1e-1, atol=3e-2)
    np.testing.assert_allclose(np.asarray(aw_bf), np.asarray(aw_ref), rtol=1e-1, atol=3e-2)

    print("KERNEL_OK")
</pallas_src>

<mosaic_0001>
module attributes {stable_mosaic.version = 11 : i64} {
  func.func @attention_kernel(%arg0: i32, %arg1: memref<2x32xf32, #tpu.memory_space<vmem>>, %arg2: memref<2x8x32xf32, #tpu.memory_space<vmem>>, %arg3: memref<2x8x6xf32, #tpu.memory_space<vmem>>, %arg4: memref<2x8xf32, #tpu.memory_space<vmem>>, %arg5: memref<2x8x16xf32, #tpu.memory_space<vmem>>, %arg6: memref<32x32xf32, #tpu.memory_space<vmem>>, %arg7: memref<6x4xf32, #tpu.memory_space<vmem>>, %arg8: memref<4x32xf32, #tpu.memory_space<vmem>>, %arg9: memref<1x32xf32, #tpu.memory_space<vmem>>, %arg10: memref<2x16xf32, #tpu.memory_space<vmem>>, %arg11: memref<2x8xf32, #tpu.memory_space<vmem>>) attributes {dimension_semantics = [#tpu.dimension_semantics<parallel>], iteration_bounds = array<i64: 1>, scalar_prefetch = 0 : i64, scratch_operands = 0 : i64, tpu.core_type = #tpu.core_type<tc>, window_params = [{transform_indices = @transform_0, window_bounds = array<i64: 2, 32>}, {transform_indices = @transform_1, window_bounds = array<i64: 2, 8, 32>}, {transform_indices = @transform_2, window_bounds = array<i64: 2, 8, 6>}, {transform_indices = @transform_3, window_bounds = array<i64: 2, 8>}, {transform_indices = @transform_4, window_bounds = array<i64: 2, 8, 16>}, {pipeline_mode = #tpu.pipeline_mode<synchronous>, transform_indices = @transform_5, window_bounds = array<i64: 32, 32>}, {pipeline_mode = #tpu.pipeline_mode<synchronous>, transform_indices = @transform_6, window_bounds = array<i64: 6, 4>}, {pipeline_mode = #tpu.pipeline_mode<synchronous>, transform_indices = @transform_7, window_bounds = array<i64: 4, 32>}, {pipeline_mode = #tpu.pipeline_mode<synchronous>, transform_indices = @transform_8, window_bounds = array<i64: 1, 32>}, {transform_indices = @transform_9, window_bounds = array<i64: 2, 16>}, {transform_indices = @transform_10, window_bounds = array<i64: 2, 8>}]} {
    %c0 = arith.constant 0 : index
    %c0_0 = arith.constant 0 : index
    %0 = vector.load %arg1[%c0, %c0_0] : memref<2x32xf32, #tpu.memory_space<vmem>>, vector<2x32xf32>
    %c0_1 = arith.constant 0 : index
    %c0_2 = arith.constant 0 : index
    %c0_3 = arith.constant 0 : index
    %1 = vector.load %arg2[%c0_1, %c0_2, %c0_3] : memref<2x8x32xf32, #tpu.memory_space<vmem>>, vector<2x8x32xf32>
    %c0_4 = arith.constant 0 : index
    %c0_5 = arith.constant 0 : index
    %c0_6 = arith.constant 0 : index
    %2 = vector.load %arg3[%c0_4, %c0_5, %c0_6] : memref<2x8x6xf32, #tpu.memory_space<vmem>>, vector<2x8x6xf32>
    %c0_7 = arith.constant 0 : index
    %c0_8 = arith.constant 0 : index
    %3 = vector.load %arg4[%c0_7, %c0_8] : memref<2x8xf32, #tpu.memory_space<vmem>>, vector<2x8xf32>
    %c0_9 = arith.constant 0 : index
    %c0_10 = arith.constant 0 : index
    %c0_11 = arith.constant 0 : index
    %4 = vector.load %arg5[%c0_9, %c0_10, %c0_11] : memref<2x8x16xf32, #tpu.memory_space<vmem>>, vector<2x8x16xf32>
    %c0_12 = arith.constant 0 : index
    %c0_13 = arith.constant 0 : index
    %5 = vector.load %arg6[%c0_12, %c0_13] : memref<32x32xf32, #tpu.memory_space<vmem>>, vector<32x32xf32>
    %c0_14 = arith.constant 0 : index
    %c0_15 = arith.constant 0 : index
    %6 = vector.load %arg7[%c0_14, %c0_15] : memref<6x4xf32, #tpu.memory_space<vmem>>, vector<6x4xf32>
    %c0_16 = arith.constant 0 : index
    %c0_17 = arith.constant 0 : index
    %7 = vector.load %arg8[%c0_16, %c0_17] : memref<4x32xf32, #tpu.memory_space<vmem>>, vector<4x32xf32>
    %c0_18 = arith.constant 0 : index
    %c0_19 = arith.constant 0 : index
    %8 = vector.load %arg9[%c0_18, %c0_19] : memref<1x32xf32, #tpu.memory_space<vmem>>, vector<1x32xf32>
    %cst = arith.constant dense<0.000000e+00> : vector<2x32xf32>
    %9 = tpu.matmul %0, %5, %cst {dimension_numbers = #tpu.dot_dimension_numbers<[1], [0], [0], [1], [0, 0, 1, 1], [], []>} : vector<2x32xf32>, vector<32x32xf32>, vector<2x32xf32> -> vector<2x32xf32>
    %10 = vector.shape_cast %2 : vector<2x8x6xf32> to vector<16x6xf32>
    %cst_20 = arith.constant dense<0.000000e+00> : vector<16x4xf32>
    %11 = tpu.matmul %10, %6, %cst_20 {dimension_numbers = #tpu.dot_dimension_numbers<[1], [0], [0], [1], [0, 0, 1, 1], [], []>} : vector<16x6xf32>, vector<6x4xf32>, vector<16x4xf32> -> vector<16x4xf32>
    %cst_21 = arith.constant dense<0.000000e+00> : vector<16x32xf32>
    %12 = tpu.matmul %11, %7, %cst_21 {dimension_numbers = #tpu.dot_dimension_numbers<[1], [0], [0], [1], [0, 0, 1, 1], [], []>} : vector<16x4xf32>, vector<4x32xf32>, vector<16x32xf32> -> vector<16x32xf32>
    %13 = vector.shape_cast %12 : vector<16x32xf32> to vector<2x8x32xf32>
    %14 = vector.shape_cast %9 : vector<2x32xf32> to vector<2x1x32xf32>
    %15 = vector.broadcast %14 : vector<2x1x32xf32> to vector<2x8x32xf32>
    %16 = arith.addf %15, %13 : vector<2x8x32xf32>
    %17 = arith.addf %16, %1 : vector<2x8x32xf32>
    %18 = math.tanh %17 : vector<2x8x32xf32>
    %19 = vector.shape_cast %8 : vector<1x32xf32> to vector<1x1x32xf32>
    %20 = vector.broadcast %19 : vector<1x1x32xf32> to vector<2x8x32xf32>
    %21 = arith.mulf %18, %20 : vector<2x8x32xf32>
    %cst_22 = arith.constant dense<0.000000e+00> : vector<2x8xf32>
    %22 = vector.multi_reduction <add>, %21, %cst_22 [2] : vector<2x8x32xf32> to vector<2x8xf32>
    %cst_23 = arith.constant 5.000000e-01 : f32
    %23 = vector.broadcast %cst_23 : f32 to vector<2x8xf32>
    %24 = arith.cmpf ogt, %3, %23 : vector<2x8xf32>
    %cst_24 = arith.constant -1.000000e+30 : f32
    %25 = vector.broadcast %cst_24 : f32 to vector<2x8xf32>
    %26 = arith.select %24, %25, %22 : vector<2x8xi1>, vector<2x8xf32>
    %cst_25 = arith.constant dense<0xFF800000> : vector<2xf32>
    %27 = vector.multi_reduction <maximumf>, %26, %cst_25 [1] : vector<2x8xf32> to vector<2xf32>
    %28 = vector.shape_cast %27 : vector<2xf32> to vector<2x1xf32>
    %29 = vector.broadcast %28 : vector<2x1xf32> to vector<2x8xf32>
    %30 = arith.subf %26, %29 : vector<2x8xf32>
    %31 = math.exp %30 : vector<2x8xf32>
    %cst_26 = arith.constant dense<0.000000e+00> : vector<2xf32>
    %32 = vector.multi_reduction <add>, %31, %cst_26 [1] : vector<2x8xf32> to vector<2xf32>
    %33 = vector.shape_cast %32 : vector<2xf32> to vector<2x1xf32>
    %34 = vector.broadcast %33 : vector<2x1xf32> to vector<2x8xf32>
    %35 = arith.divf %31, %34 : vector<2x8xf32>
    %36 = vector.shape_cast %35 : vector<2x8xf32> to vector<2x8x1xf32>
    %37 = vector.broadcast %36 : vector<2x8x1xf32> to vector<2x8x16xf32>
    %38 = arith.mulf %37, %4 : vector<2x8x16xf32>
    %cst_27 = arith.constant dense<0.000000e+00> : vector<2x16xf32>
    %39 = vector.multi_reduction <add>, %38, %cst_27 [1] : vector<2x8x16xf32> to vector<2x16xf32>
    %c0_28 = arith.constant 0 : index
    %c0_29 = arith.constant 0 : index
    %40 = vector.load %arg11[%c0_28, %c0_29] : memref<2x8xf32, #tpu.memory_space<vmem>>, vector<2x8xf32>
    tpu.vector_store %arg11[%c0_28, %c0_29], %35 {strides = array<i32>} : memref<2x8xf32, #tpu.memory_space<vmem>>, vector<2x8xf32>,
    %c0_30 = arith.constant 0 : index
    %c0_31 = arith.constant 0 : index
    %41 = vector.load %arg10[%c0_30, %c0_31] : memref<2x16xf32, #tpu.memory_space<vmem>>, vector<2x16xf32>
    tpu.vector_store %arg10[%c0_30, %c0_31], %39 {strides = array<i32>} : memref<2x16xf32, #tpu.memory_space<vmem>>, vector<2x16xf32>,
    return
  }
  func.func @transform_0(%arg0: i32) -> (i32, i32) {
    %c0_i32 = arith.constant 0 : i32
    %c0_i32_0 = arith.constant 0 : i32
    return %arg0, %c0_i32 : i32, i32
  }
  func.func @transform_1(%arg0: i32) -> (i32, i32, i32) {
    %c0_i32 = arith.constant 0 : i32
    %c0_i32_0 = arith.constant 0 : i32
    %c0_i32_1 = arith.constant 0 : i32
    return %arg0, %c0_i32, %c0_i32_0 : i32, i32, i32
  }
  func.func @transform_2(%arg0: i32) -> (i32, i32, i32) {
    %c0_i32 = arith.constant 0 : i32
    %c0_i32_0 = arith.constant 0 : i32
    %c0_i32_1 = arith.constant 0 : i32
    return %arg0, %c0_i32, %c0_i32_0 : i32, i32, i32
  }
  func.func @transform_3(%arg0: i32) -> (i32, i32) {
    %c0_i32 = arith.constant 0 : i32
    %c0_i32_0 = arith.constant 0 : i32
    return %arg0, %c0_i32 : i32, i32
  }
  func.func @transform_4(%arg0: i32) -> (i32, i32, i32) {
    %c0_i32 = arith.constant 0 : i32
    %c0_i32_0 = arith.constant 0 : i32
    %c0_i32_1 = arith.constant 0 : i32
    return %arg0, %c0_i32, %c0_i32_0 : i32, i32, i32
  }
  func.func @transform_5(%arg0: i32) -> (i32, i32) {
    %c0_i32 = arith.constant 0 : i32
    %c0_i32_0 = arith.constant 0 : i32
    %c0_i32_1 = arith.constant 0 : i32
    return %c0_i32, %c0_i32_0 : i32, i32
  }
  func.func @transform_6(%arg0: i32) -> (i32, i32) {
    %c0_i32 = arith.constant 0 : i32
    %c0_i32_0 = arith.constant 0 : i32
    %c0_i32_1 = arith.constant 0 : i32
    return %c0_i32, %c0_i32_0 : i32, i32
  }
  func.func @transform_7(%arg0: i32) -> (i32, i32) {
    %c0_i32 = arith.constant 0 : i32
    %c0_i32_0 = arith.constant 0 : i32
    %c0_i32_1 = arith.constant 0 : i32
    return %c0_i32, %c0_i32_0 : i32, i32
  }
  func.func @transform_8(%arg0: i32) -> (i32, i32) {
    %c0_i32 = arith.constant 0 : i32
    %c0_i32_0 = arith.constant 0 : i32
    %c0_i32_1 = arith.constant 0 : i32
    return %c0_i32, %c0_i32_0 : i32, i32
  }
  func.func @transform_9(%arg0: i32) -> (i32, i32) {
    %c0_i32 = arith.constant 0 : i32
    %c0_i32_0 = arith.constant 0 : i32
    return %arg0, %c0_i32 : i32, i32
  }
  func.func @transform_10(%arg0: i32) -> (i32, i32) {
    %c0_i32 = arith.constant 0 : i32
    %c0_i32_0 = arith.constant 0 : i32
    return %arg0, %c0_i32 : i32, i32
  }
}

</mosaic_0001>

<llo_original>
// kernel: tpu_custom_call.1
$region0: #{tpu_custom_call.1}
  #allocation0 [shape = 'u32[]', space=smem, size = 0x4, offset = 0x4, fixed_abs, tag = 'smem constant byte address 0x4 - core index']
  #allocation1 [shape = 'u32[144,128]{1,0:T(1,128)}', space=vmem, size = 0x12000, scoped, tag = 'internal scratch']
  %s0 = inlined_call_operand.vmem [shape: f32[2,32], index: 0, kind: input, shape index: {}]
  %s1 = inlined_call_operand.vmem [shape: f32[2,8,32], index: 1, kind: input, shape index: {}]
  %s2 = inlined_call_operand.vmem [shape: f32[2,8,6], index: 2, kind: input, shape index: {}]
  %s3 = inlined_call_operand.vmem [shape: f32[2,8], index: 3, kind: input, shape index: {}]
  %s4 = inlined_call_operand.hbm [shape: f32[2,8,16], index: 4, kind: input, shape index: {}]
  %s5 = inlined_call_operand.vmem [shape: f32[32,32], index: 5, kind: input, shape index: {}]
  %s6 = inlined_call_operand.vmem [shape: f32[6,4], index: 6, kind: input, shape index: {}]
  %s7 = inlined_call_operand.vmem [shape: f32[4,32], index: 7, kind: input, shape index: {}]
  %s8 = inlined_call_operand.vmem [shape: f32[1,32], index: 8, kind: input, shape index: {}]
  %s9 = inlined_call_operand.hbm [shape: f32[2,16], index: 9, kind: output, shape index: {0}]
  %s10 = inlined_call_operand.hbm [shape: f32[2,8], index: 10, kind: output, shape index: {1}]
  %11 = xla_tuple %s9, %s10
  %s12 = sld [smem:[#allocation0]]
  $region58: #{tpu_custom_call.1} parent=0
    _
  %s14 = ssub.s32 1, %s12
  %s15 = scalar_select 0, %s14, %s12
  $region1: #{tpu_custom_call.1} parent=0
    #allocation2 [shape = 'u8[8192]{0}', space=vmem, size = 0x2000, scoped, tag = 'input window, operand 4, single buffered']
    #allocation3 [shape = 's32[1]{0}', space=sflag, size = 0x4, scoped, tag = 'scoped memory for tpu_custom_call.1']
    #allocation4 [shape = 's32[1]{0}', space=sflag, size = 0x4, scoped, tag = 'scoped memory for tpu_custom_call.1']
    #allocation5 [shape = 'u8[1024]{0}', space=vmem, size = 0x400, scoped, tag = 'output window, operand 0, single buffered']
    #allocation6 [shape = 'u8[1024]{0}', space=vmem, size = 0x400, scoped, tag = 'output window, operand 1, single buffered']
    #allocation7 [shape = 's32[1]{0}', space=sflag, size = 0x4, scoped, tag = 'scoped memory for tpu_custom_call.1']
    %16 = vsyncpa [#allocation3], 0
    %17 = vsyncpa [#allocation4], 0
    %18 = vsyncpa [#allocation7], 0
    // Predicated region
    $region2: #{tpu_custom_call.1} parent=1 // pred_check
      _
    $region3: #{tpu_custom_call.1} parent=1 // pred_check_branch
      %20 = sbr.rel (0) target = $region5
    $region4: #{tpu_custom_call.1} parent=1 // pred_region
      _
    $region5: #{tpu_custom_call.1} parent=1 // pred_fallthru
      _
    // Predicated region
    $region6: #{tpu_custom_call.1} parent=1 // pred_check
      _
    $region7: #{tpu_custom_call.1} parent=1 // pred_check_branch
      %22 = sbr.rel (0) target = $region9
    $region8: #{tpu_custom_call.1} parent=1 // pred_region
      _
    $region9: #{tpu_custom_call.1} parent=1 // pred_fallthru
      _
    // Predicated region
    $region10: #{tpu_custom_call.1} parent=1 // pred_check
      _
    $region11: #{tpu_custom_call.1} parent=1 // pred_check_branch
      %24 = sbr.rel (0) target = $region13
    $region12: #{tpu_custom_call.1} parent=1 // pred_region
      _
    $region13: #{tpu_custom_call.1} parent=1 // pred_fallthru
      _
    // Predicated region
    $region14: #{tpu_custom_call.1} parent=1 // pred_check
      _
    $region15: #{tpu_custom_call.1} parent=1 // pred_check_branch
      %26 = sbr.rel (0) target = $region17
    $region16: #{tpu_custom_call.1} parent=1 // pred_region
      _
    $region17: #{tpu_custom_call.1} parent=1 // pred_fallthru
      _
    // Predicated region
    $region18: #{tpu_custom_call.1} parent=1 // pred_check
      _
    $region19: #{tpu_custom_call.1} parent=1 // pred_check_branch
      %28 = sbr.rel (0) target = $region21
    $region20: #{tpu_custom_call.1} parent=1 // pred_region
      %s30 = ssub.s32 256, 256
      %31 = vsyncadd [#allocation3], %s30
      %s32 = sshll.u32 [#allocation2], 4
      %s33 = int_to_ptr.vmem [resolvable:$true] %s32
      %38 = dma.hbm_to_vmem [thread:$0]  %s4, 256, %s33, [#allocation3], 128, 128, 8
    $region21: #{tpu_custom_call.1} parent=1 // pred_fallthru
      _
    // Predicated region
    $region22: #{tpu_custom_call.1} parent=1 // pred_check
      _
    $region23: #{tpu_custom_call.1} parent=1 // pred_check_branch
      %40 = sbr.rel (0) target = $region25
    $region24: #{tpu_custom_call.1} parent=1 // pred_region
      _
    $region25: #{tpu_custom_call.1} parent=1 // pred_fallthru
      _
    // Predicated region
    $region26: #{tpu_custom_call.1} parent=1 // pred_check
      _
    $region27: #{tpu_custom_call.1} parent=1 // pred_check_branch
      %42 = sbr.rel (0) target = $region29
    $region28: #{tpu_custom_call.1} parent=1 // pred_region
      _
    $region29: #{tpu_custom_call.1} parent=1 // pred_fallthru
      _
    // Predicated region
    $region30: #{tpu_custom_call.1} parent=1 // pred_check
      _
    $region31: #{tpu_custom_call.1} parent=1 // pred_check_branch
      %44 = sbr.rel (0) target = $region33
    $region32: #{tpu_custom_call.1} parent=1 // pred_region
      _
    $region33: #{tpu_custom_call.1} parent=1 // pred_fallthru
      _
    // Predicated region
    $region34: #{tpu_custom_call.1} parent=1 // pred_check
      _
    $region35: #{tpu_custom_call.1} parent=1 // pred_check_branch
      %46 = sbr.rel (0) target = $region37
    $region36: #{tpu_custom_call.1} parent=1 // pred_region
      _
    $region37: #{tpu_custom_call.1} parent=1 // pred_fallthru
      _
    // Predicated region
    $region38: #{tpu_custom_call.1} parent=1 // pred_check
      _
    $region39: #{tpu_custom_call.1} parent=1 // pred_check_branch
      %48 = sbr.rel (0) target = $region41
    $region40: #{tpu_custom_call.1} parent=1 // pred_region
      %49 = dma.done [#allocation3], 256
    $region41: #{tpu_custom_call.1} parent=1 // pred_fallthru
      _
    %v50 = vld [vmem:[%s0] sm:$0x3]
    %v51 = vld [vmem:[%s1] sm:$0xff]
    %v52 = vld [vmem:[%s1 + $0x8] sm:$0xff]
    %v53 = vld [vmem:[%s2] sm:$0xff]
    %v54 = vld [vmem:[%s2 + $0x8] sm:$0xff]
    %v55 = vld [vmem:[%s3] sm:$0x3]
    %v56 = vld [vmem:[#allocation2] sm:$0xff]
    %v57 = vld [vmem:[#allocation2 + $0x8] sm:$0xff]
    %v58 = vld [vmem:[%s5] sm:$0xff]
    %v59 = vld [vmem:[%s5 + $0x8] sm:$0xff]
    %v60 = vld [vmem:[%s5 + $0x10] sm:$0xff]
    %v61 = vld [vmem:[%s5 + $0x18] sm:$0xff]
    %v62 = vld [vmem:[%s6] sm:$0x3f]
    %v63 = vld [vmem:[%s7] sm:$0xf]
    %v64 = vld [vmem:[%s8] sm:$0x1]
    %vm65 = vcmask 261120
    %v67 = vsel %vm65, %v50, 0
    %69 = vmatprep.subr.mxu0 0.0
    %70 = vmatpush1.msra.mxu0 %v58
    %71 = vmatprep.subr.mxu0 0.0
    %72 = vmatpush1.msra.mxu0 %v59
    %73 = vmatprep.subr.mxu0 0.0
    %74 = vmatpush1.msra.mxu0 %v60
    %75 = vmatprep.subr.mxu0 0.0
    %76 = vmatpush1.msra.mxu0 %v61
    %77 = vmatprep.subr.mxu0 0.0
    %78 = vmatpush1.msra.mxu0 0.0
    %79 = vmatprep.subr.mxu0 0.0
    %80 = vmatpush1.msra.mxu0 0.0
    %81 = vmatprep.subr.mxu0 0.0
    %82 = vmatpush1.msra.mxu0 0.0
    %83 = vmatprep.subr.mxu0 0.0
    %84 = vmatpush1.msra.mxu0 0.0
    %85 = vmatprep.subr.mxu0 0.0
    %86 = vmatpush1.msra.mxu0 0.0
    %87 = vmatprep.subr.mxu0 0.0
    %88 = vmatpush1.msra.mxu0 0.0
    %89 = vmatprep.subr.mxu0 0.0
    %90 = vmatpush1.msra.mxu0 0.0
    %91 = vmatprep.subr.mxu0 0.0
    %92 = vmatpush1.msra.mxu0 0.0
    %93 = vmatprep.subr.mxu0 0.0
    %94 = vmatpush1.msra.mxu0 0.0
    %95 = vmatprep.subr.mxu0 0.0
    %96 = vmatpush1.msra.mxu0 0.0
    %97 = vmatprep.subr.mxu0 0.0
    %98 = vmatpush1.msra.mxu0 0.0
    %99 = vmatprep.subr.mxu0 0.0
    %100 = vmatpush1.msra.mxu0 0.0
    %101 = vmatprep.subr.mxu0 0.0
    %102 = vmatpush1.msra.mxu0 0.0
    %103 = vmatprep.subr.mxu0 0.0
    %104 = vmatpush1.msra.mxu0 0.0
    %105 = vmatprep.subr.mxu0 0.0
    %106 = vmatpush1.msra.mxu0 0.0
    %107 = vmatprep.subr.mxu0 0.0
    %108 = vmatpush1.msra.mxu0 0.0
    %109 = vmatprep.subr.mxu0 0.0
    %110 = vmatpush1.msra.mxu0 0.0
    %111 = vmatprep.subr.mxu0 0.0
    %112 = vmatpush1.msra.mxu0 0.0
    %113 = vmatprep.subr.mxu0 0.0
    %114 = vmatpush1.msra.mxu0 0.0
    %115 = vmatprep.subr.mxu0 0.0
    %116 = vmatpush1.msra.mxu0 0.0
    %117 = vmatprep.subr.mxu0 0.0
    %118 = vmatpush1.msra.mxu0 0.0
    %119 = vmatprep.subr.mxu0 0.0
    %120 = vmatpush1.msra.mxu0 0.0
    %121 = vmatprep.subr.mxu0 0.0
    %122 = vmatpush1.msra.mxu0 0.0
    %123 = vmatprep.subr.mxu0 0.0
    %124 = vmatpush1.msra.mxu0 0.0
    %125 = vmatprep.subr.mxu0 0.0
    %126 = vmatpush1.msra.mxu0 0.0
    %127 = vmatprep.subr.mxu0 0.0
    %128 = vmatpush1.msra.mxu0 0.0
    %129 = vmatprep.subr.mxu0 0.0
    %130 = vmatpush1.msra.mxu0 0.0
    %131 = vmatprep.subr.mxu0 0.0
    %132 = vmatpush1.msra.mxu0 0.0
    %133 = vmatprep.mubr.f32.mxu0 0.0
    %134 = vmatmul.mubr.f32.gmra.mrb[0].mxu0 %v67
    %v135 = vpop.f32.mrb[0].mxu0
    %v136 = vadd.f32 0.0, %v135
    %v137 = vpop.f32.mrb[0].mxu0
    %138 = vdwg.mxu0
    %vm139 = vcmask 48128
    %v141 = vsel %vm139, %v53, 0
    %v144 = vsel %vm139, %v54, 0
    %vm146 = vcmask 1045504
    %v148 = vsel %vm146, %v62, 0
    %150 = vmatprep.subr.mxu0 0.0
    %151 = vmatpush1.msra.mxu0 %v148
    %152 = vmatprep.subr.mxu0 0.0
    %153 = vmatpush1.msra.mxu0 0.0
    %154 = vmatprep.subr.mxu0 0.0
    %155 = vmatpush1.msra.mxu0 0.0
    %156 = vmatprep.subr.mxu0 0.0
    %157 = vmatpush1.msra.mxu0 0.0
    %158 = vmatprep.subr.mxu0 0.0
    %159 = vmatpush1.msra.mxu0 0.0
    %160 = vmatprep.subr.mxu0 0.0
    %161 = vmatpush1.msra.mxu0 0.0
    %162 = vmatprep.subr.mxu0 0.0
    %163 = vmatpush1.msra.mxu0 0.0
    %164 = vmatprep.subr.mxu0 0.0
    %165 = vmatpush1.msra.mxu0 0.0
    %166 = vmatprep.subr.mxu0 0.0
    %167 = vmatpush1.msra.mxu0 0.0
    %168 = vmatprep.subr.mxu0 0.0
    %169 = vmatpush1.msra.mxu0 0.0
    %170 = vmatprep.subr.mxu0 0.0
    %171 = vmatpush1.msra.mxu0 0.0
    %172 = vmatprep.subr.mxu0 0.0
    %173 = vmatpush1.msra.mxu0 0.0
    %174 = vmatprep.subr.mxu0 0.0
    %175 = vmatpush1.msra.mxu0 0.0
    %176 = vmatprep.subr.mxu0 0.0
    %177 = vmatpush1.msra.mxu0 0.0
    %178 = vmatprep.subr.mxu0 0.0
    %179 = vmatpush1.msra.mxu0 0.0
    %180 = vmatprep.subr.mxu0 0.0
    %181 = vmatpush1.msra.mxu0 0.0
    %182 = vmatprep.subr.mxu0 0.0
    %183 = vmatpush1.msra.mxu0 0.0
    %184 = vmatprep.subr.mxu0 0.0
    %185 = vmatpush1.msra.mxu0 0.0
    %186 = vmatprep.subr.mxu0 0.0
    %187 = vmatpush1.msra.mxu0 0.0
    %188 = vmatprep.subr.mxu0 0.0
    %189 = vmatpush1.msra.mxu0 0.0
    %190 = vmatprep.subr.mxu0 0.0
    %191 = vmatpush1.msra.mxu0 0.0
    %192 = vmatprep.subr.mxu0 0.0
    %193 = vmatpush1.msra.mxu0 0.0
    %194 = vmatprep.subr.mxu0 0.0
    %195 = vmatpush1.msra.mxu0 0.0
    %196 = vmatprep.subr.mxu0 0.0
    %197 = vmatpush1.msra.mxu0 0.0
    %198 = vmatprep.subr.mxu0 0.0
    %199 = vmatpush1.msra.mxu0 0.0
    %200 = vmatprep.subr.mxu0 0.0
    %201 = vmatpush1.msra.mxu0 0.0
    %202 = vmatprep.subr.mxu0 0.0
    %203 = vmatpush1.msra.mxu0 0.0
    %204 = vmatprep.subr.mxu0 0.0
    %205 = vmatpush1.msra.mxu0 0.0
    %206 = vmatprep.subr.mxu0 0.0
    %207 = vmatpush1.msra.mxu0 0.0
    %208 = vmatprep.subr.mxu0 0.0
    %209 = vmatpush1.msra.mxu0 0.0
    %210 = vmatprep.subr.mxu0 0.0
    %211 = vmatpush1.msra.mxu0 0.0
    %212 = vmatprep.subr.mxu0 0.0
    %213 = vmatpush1.msra.mxu0 0.0
    %214 = vmatprep.mubr.f32.mxu0 0.0
    %215 = vmatmul.mubr.f32.gmra.mrb[0].mxu0 %v141
    %v216 = vpop.f32.mrb[0].mxu0
    %v217 = vadd.f32 0.0, %v216
    %v218 = vpop.f32.mrb[0].mxu0
    %219 = vmatprep.mubr.f32.mxu0 0.0
    %220 = vmatmul.mubr.f32.gmra.mrb[0].mxu0 %v144
    %v221 = vpop.f32.mrb[0].mxu0
    %v222 = vadd.f32 0.0, %v221
    %v223 = vpop.f32.mrb[0].mxu0
    %224 = vdwg.mxu0
    %vm225 = vcmask 31744
    %v227 = vsel %vm225, %v217, 0
    %v230 = vsel %vm225, %v222, 0
    %vm232 = vcmask 1043456
    %v234 = vsel %vm232, %v63, 0
    %236 = vmatprep.subr.mxu0 0.0
    %237 = vmatpush1.msra.mxu0 %v234
    %238 = vmatprep.subr.mxu0 0.0
    %239 = vmatpush1.msra.mxu0 0.0
    %240 = vmatprep.subr.mxu0 0.0
    %241 = vmatpush1.msra.mxu0 0.0
    %242 = vmatprep.subr.mxu0 0.0
    %243 = vmatpush1.msra.mxu0 0.0
    %244 = vmatprep.subr.mxu0 0.0
    %245 = vmatpush1.msra.mxu0 0.0
    %246 = vmatprep.subr.mxu0 0.0
    %247 = vmatpush1.msra.mxu0 0.0
    %248 = vmatprep.subr.mxu0 0.0
    %249 = vmatpush1.msra.mxu0 0.0
    %250 = vmatprep.subr.mxu0 0.0
    %251 = vmatpush1.msra.mxu0 0.0
    %252 = vmatprep.subr.mxu0 0.0
    %253 = vmatpush1.msra.mxu0 0.0
    %254 = vmatprep.subr.mxu0 0.0
    %255 = vmatpush1.msra.mxu0 0.0
    %256 = vmatprep.subr.mxu0 0.0
    %257 = vmatpush1.msra.mxu0 0.0
    %258 = vmatprep.subr.mxu0 0.0
    %259 = vmatpush1.msra.mxu0 0.0
    %260 = vmatprep.subr.mxu0 0.0
    %261 = vmatpush1.msra.mxu0 0.0
    %262 = vmatprep.subr.mxu0 0.0
    %263 = vmatpush1.msra.mxu0 0.0
    %264 = vmatprep.subr.mxu0 0.0
    %265 = vmatpush1.msra.mxu0 0.0
    %266 = vmatprep.subr.mxu0 0.0
    %267 = vmatpush1.msra.mxu0 0.0
    %268 = vmatprep.subr.mxu0 0.0
    %269 = vmatpush1.msra.mxu0 0.0
    %270 = vmatprep.subr.mxu0 0.0
    %271 = vmatpush1.msra.mxu0 0.0
    %272 = vmatprep.subr.mxu0 0.0
    %273 = vmatpush1.msra.mxu0 0.0
    %274 = vmatprep.subr.mxu0 0.0
    %275 = vmatpush1.msra.mxu0 0.0
    %276 = vmatprep.subr.mxu0 0.0
    %277 = vmatpush1.msra.mxu0 0.0
    %278 = vmatprep.subr.mxu0 0.0
    %279 = vmatpush1.msra.mxu0 0.0
    %280 = vmatprep.subr.mxu0 0.0
    %281 = vmatpush1.msra.mxu0 0.0
    %282 = vmatprep.subr.mxu0 0.0
    %283 = vmatpush1.msra.mxu0 0.0
    %284 = vmatprep.subr.mxu0 0.0
    %285 = vmatpush1.msra.mxu0 0.0
    %286 = vmatprep.subr.mxu0 0.0
    %287 = vmatpush1.msra.mxu0 0.0
    %288 = vmatprep.subr.mxu0 0.0
    %289 = vmatpush1.msra.mxu0 0.0
    %290 = vmatprep.subr.mxu0 0.0
    %291 = vmatpush1.msra.mxu0 0.0
    %292 = vmatprep.subr.mxu0 0.0
    %293 = vmatpush1.msra.mxu0 0.0
    %294 = vmatprep.subr.mxu0 0.0
    %295 = vmatpush1.msra.mxu0 0.0
    %296 = vmatprep.subr.mxu0 0.0
    %297 = vmatpush1.msra.mxu0 0.0
    %298 = vmatprep.subr.mxu0 0.0
    %299 = vmatpush1.msra.mxu0 0.0
    %300 = vmatprep.mubr.f32.mxu0 0.0
    %301 = vmatmul.mubr.f32.gmra.mrb[0].mxu0 %v227
    %v302 = vpop.f32.mrb[0].mxu0
    %v303 = vadd.f32 0.0, %v302
    %v304 = vpop.f32.mrb[0].mxu0
    %305 = vmatprep.mubr.f32.mxu0 0.0
    %306 = vmatmul.mubr.f32.gmra.mrb[0].mxu0 %v230
    %v307 = vpop.f32.mrb[0].mxu0
    %v308 = vadd.f32 0.0, %v307
    %v309 = vpop.f32.mrb[0].mxu0
    %310 = vdwg.mxu0
    %v313 = vunpack.c.l.s4 1966171168
    %v314 = vunpack.c.0.s8 %v313
    %v315 = vlaneseq
    %v316 = vshrl.u32 %v315, 7
    %v317 = vsub.s32 %v314, %v316
    %v318 = vrot.slane %v136, %v317
    %v319 = vcombine.high %v318, %v318
    %v321 = vunpack.c.l.s4 1966171168
    %v322 = vunpack.c.0.s8 %v321
    %v323 = vlaneseq
    %v324 = vshrl.u32 %v323, 7
    %v325 = vsub.s32 %v322, %v324
    %v326 = vrot.slane %v318, %v325
    %v328 = vunpack.c.l.s4 1966171168
    %v329 = vunpack.c.0.s8 %v328
    %v330 = vlaneseq
    %v331 = vshrl.u32 %v330, 7
    %v332 = vsub.s32 %v329, %v331
    %v333 = vrot.slane %v319, %v332
    %v334 = vlaneseq
    %v335 = vshrl.u32 %v334, 7
    %v336 = vsub.s32 0, %v335
    %v337 = vrot.slane %v326, %v336
    %v338 = vlaneseq
    %v339 = vshrl.u32 %v338, 7
    %v340 = vsub.s32 0, %v339
    %v341 = vrot.slane %v333, %v340
    %v344 = vadd.f32 %v337, %v303
    %v345 = vadd.f32 %v341, %v308
    %v346 = vadd.f32 %v344, %v51
    %v347 = vadd.f32 %v345, %v52
    %v348 = vtanh.pop %v346
    %v349 = vtanh.pop %v347
    %v351 = vlaneseq
    %v352 = vshrl.u32 %v351, 7
    %v353 = vsub.s32 0, %v352
    %v354 = vrot.slane %v64, %v353
    %v356 = vmul.f32 %v348, %v354
    %v357 = vmul.f32 %v349, %v354
    %v358 = vsel %vm65, %v356, 0.0
    %359 = vadd.xlane.f32.xlu0 %v358
    %v360 = vpop.xlane.xlu0 %359
    %v361 = vsel %vm65, %v357, 0.0
    %362 = vadd.xlane.f32.xlu0 %v361
    %v363 = vpop.xlane.xlu0 %362
    %vm364 = vcmp.gt.f32.partialorder %v55, 0.5
    %v367 = vlaneseq
    %v368 = vand.u32 %v367, 127
    %v369 = vlaneseq
    %v370 = vshrl.u32 %v369, 7
    %v371 = vsub.s32 %v368, %v370
    %v372 = vrot.slane %v360, %v371
    %v373 = vlaneseq
    %v374 = vshrl.u32 %v373, 7
    %v375 = vsub.s32 %v368, %v374
    %v376 = vrot.slane %v363, %v375
    %vm377 = vcmask 1041409
    %v378 = vsel %vm377, %v376, %v372
    %v380 = vsel %vm364, -1e+30, %v378
    %vm381 = vcmask 58368
    %v382 = vsel %vm381, %v380, -inf
    %383 = vmax.xlane.f32.xlu0 %v382
    %v384 = vpop.xlane.xlu0 %383
    %v385 = vsub.f32 %v380, %v384
    %v386 = vmul.f32 %v385, 1.442695
    %v387 = vpow.pop %v386
    %v388 = vsel %vm381, %v387, 0.0
    %389 = vadd.xlane.f32.xlu0 %v388
    %v390 = vpop.xlane.xlu0 %389
    %v391 = vrcp.pop %v390
    %v392 = vmul.f32 %v387, %v391
    %v393 = vlaneseq
    %v394 = vshrl.u32 %v393, 7
    %v395 = vsub.s32 0, %v394
    %v396 = vrot.slane %v392, %v395
    %398 = vbcast.lane.b32.xlu0 %v396, 256
    %v399 = vpop.permute.xlu0 %398
    %v400 = vlaneseq
    %v401 = vshrl.u32 %v400, 7
    %v402 = vsub.s32 1, %v401
    %v403 = vrot.slane %v392, %v402
    %405 = vbcast.lane.b32.xlu0 %v403, 256
    %v406 = vpop.permute.xlu0 %405
    %v407 = vmul.f32 %v399, %v56
    %v408 = vmul.f32 %v406, %v57
    %vm409 = vcmask 130048
    %v410 = vsel %vm409, %v407, 0.0
    %v411 = vrot.slane %v410, 4
    %v412 = vadd.f32 %v410, %v411
    %v413 = vrot.slane %v412, 2
    %v414 = vadd.f32 %v412, %v413
    %v415 = vrot.slane %v414, 1
    %v416 = vadd.f32 %v414, %v415
    %v417 = vsel %vm409, %v408, 0.0
    %v418 = vrot.slane %v417, 4
    %v419 = vadd.f32 %v417, %v418
    %v420 = vrot.slane %v419, 2
    %v421 = vadd.f32 %v419, %v420
    %v422 = vrot.slane %v421, 1
    %v423 = vadd.f32 %v421, %v422
    %424 = vst.msk [vmem:[#allocation6] sm:$0x3] %vm381, %v392
    %v427 = vsel %vm377, %v423, %v416
    %vm429 = vcmask 123904
    %430 = vst.msk [vmem:[#allocation5] sm:$0x3] %vm429, %v427
    // Predicated region
    $region42: #{tpu_custom_call.1} parent=1 // pred_check
      _
    $region43: #{tpu_custom_call.1} parent=1 // pred_check_branch
      %432 = sbr.rel (0) target = $region45
    $region44: #{tpu_custom_call.1} parent=1 // pred_region
      %s434 = ssub.s32 32, 32
      %435 = vsyncadd [#allocation4], %s434
      %s437 = sshll.u32 [#allocation5], 4
      %s438 = int_to_ptr.vmem [resolvable:$true] %s437
      %440 = dma.vmem_to_hbm [thread:$0]  %s438, 32, %s9, [#allocation4]
    $region45: #{tpu_custom_call.1} parent=1 // pred_fallthru
      _
    // Predicated region
    $region46: #{tpu_custom_call.1} parent=1 // pred_check
      _
    $region47: #{tpu_custom_call.1} parent=1 // pred_check_branch
      %442 = sbr.rel (0) target = $region49
    $region48: #{tpu_custom_call.1} parent=1 // pred_region
      %s444 = ssub.s32 32, 32
      %445 = vsyncadd [#allocation7], %s444
      %s447 = sshll.u32 [#allocation6], 4
      %s448 = int_to_ptr.vmem [resolvable:$true] %s447
      %450 = dma.vmem_to_hbm [thread:$0]  %s448, 32, %s10, [#allocation7]
    $region49: #{tpu_custom_call.1} parent=1 // pred_fallthru
      _
    // Predicated region
    $region50: #{tpu_custom_call.1} parent=1 // pred_check
      _
    $region51: #{tpu_custom_call.1} parent=1 // pred_check_branch
      %452 = sbr.rel (0) target = $region53
    $region52: #{tpu_custom_call.1} parent=1 // pred_region
      %453 = dma.done [#allocation4], 32
    $region53: #{tpu_custom_call.1} parent=1 // pred_fallthru
      _
    // Predicated region
    $region54: #{tpu_custom_call.1} parent=1 // pred_check
      _
    $region55: #{tpu_custom_call.1} parent=1 // pred_check_branch
      %455 = sbr.rel (0) target = $region57
    $region56: #{tpu_custom_call.1} parent=1 // pred_region
      %456 = dma.done [#allocation7], 32
    $region57: #{tpu_custom_call.1} parent=1 // pred_fallthru
      _
    %457 = vsyncpa [#allocation3], 1
    %458 = vsyncpa [#allocation4], 1
    %459 = vsyncpa [#allocation7], 1

</llo_original>
